<compile_context>
chip_gen: v7x
topology: tpu7x:2x2x1
jax: 0.10.0
libtpu: 0.0.40
codegen_flags: <defaults>
</compile_context>

<pallas_src>
import functools

import jax
import jax.numpy as jnp
from jax.experimental import pallas as pl
from jax.experimental.pallas import tpu as pltpu


def _round_up(x: int, m: int) -> int:
    return ((x + m - 1) // m) * m


def _cdiv(a: int, b: int) -> int:
    return (a + b - 1) // b


@functools.lru_cache(maxsize=1)
def _vmem_capacity_bytes() -> int:
    # Per-TensorCore VMEM capacity (v5e/v6e: 128 MiB, v7x: 64 MiB).
    try:
        return int(pltpu.get_tpu_info().vmem_capacity_bytes)
    except Exception:
        return 64 * 1024 * 1024  # conservative fallback (v7x per-core)


def _pick_hidden_chunk(hp: int, th_cap: int) -> int:
    """Largest multiple-of-128 chunk size <= th_cap that evenly divides hp."""
    n_units = hp // 128
    for c in range(1, n_units + 1):
        if n_units % c == 0 and (hp // c) <= th_cap:
            return hp // c
    return 128


def prepare_residual_mlp_params(w1, b1, w2, b2, compute_dtype=jnp.bfloat16):
    """One-time param prep: pad feature dims to 128 lanes, cast weights to the
    MXU compute dtype. Padded lanes are zero -> mathematically inert.
    Do this at parameter-init time, NOT per forward call."""
    D, H = w1.shape
    Dp, Hp = _round_up(D, 128), _round_up(H, 128)
    w1p = jnp.pad(w1, ((0, Dp - D), (0, Hp - H))).astype(compute_dtype)
    w2p = jnp.pad(w2, ((0, Hp - H), (0, Dp - D))).astype(compute_dtype)
    # Biases stay f32: elementwise math runs on the VPU in f32 (v5e-safe).
    b1p = jnp.pad(b1, (0, Hp - H)).reshape(1, Hp).astype(jnp.float32)
    b2p = jnp.pad(b2, (0, Dp - D)).reshape(1, Dp).astype(jnp.float32)
    return w1p, b1p, w2p, b2p


def residual_mlp_kernel(x_ref, w1_ref, b1_ref, w2_ref, b2_ref, o_ref, acc_ref):
    # x_ref : (TM, Dp)  input dtype (f32)        w1_ref: (Dp, TH)  bf16
    # b1_ref: (1,  TH)  f32                      w2_ref: (TH, Dp)  bf16
    # b2_ref: (1,  Dp)  f32                      o_ref : (TM, Dp)  input dtype
    # acc_ref: (TM, Dp) f32 scratch accumulator over hidden-dim chunks.
    k = pl.program_id(1)

    @pl.when(k == 0)
    def _init():
        acc_ref[...] = jnp.zeros_like(acc_ref)

    x = x_ref[...]
    # First matmul: bf16 operands, f32 accumulation on the MXU.
    h = jnp.dot(x.astype(w1_ref.dtype), w1_ref[...],
                preferred_element_type=jnp.float32)
    # Bias + ReLU in f32 on the VPU (v5e-safe).
    h = jnp.maximum(h + b1_ref[...], 0.0)
    # Second matmul chunk, accumulate partial products in f32.
    acc_ref[...] += jnp.dot(h.astype(w2_ref.dtype), w2_ref[...],
                            preferred_element_type=jnp.float32)

    @pl.when(k == pl.num_programs(1) - 1)
    def _finalize():
        y = acc_ref[...] + b2_ref[...]
        # Residual: inputs + module(inputs), added in f32 then cast out.
        o_ref[...] = (x.astype(jnp.float32) + y).astype(o_ref.dtype)


def _padded_reference(x2d_p, w1p, b1p, w2p, b2p):
    """Same numerics as the kernel (bf16 matmuls, f32 accumulation/elementwise)."""
    h = jnp.dot(x2d_p.astype(w1p.dtype), w1p, preferred_element_type=jnp.float32)
    h = jnp.maximum(h + b1p, 0.0)
    y = jnp.dot(h.astype(w2p.dtype), w2p, preferred_element_type=jnp.float32) + b2p
    return (x2d_p.astype(jnp.float32) + y).astype(x2d_p.dtype)


@functools.partial(jax.jit, static_argnames=("min_rows_for_pallas",))
def residual_forward(x, w1p, b1p, w2p, b2p, *, min_rows_for_pallas: int = 256):
    """x: (B, S, D). Params already padded/cast by prepare_residual_mlp_params.
    Returns x + MLP(x) with x's shape/dtype."""
    B, S, D = x.shape
    Dp, Hp = w1p.shape
    M = B * S
    x2d = x.reshape(M, D)

    # Tiny problems: launch/DMA overhead dwarfs compute -> plain XLA.
    if M < min_rows_for_pallas:
        xp = x2d if Dp == D else jnp.pad(x2d, ((0, 0), (0, Dp - D)))
        out = _padded_reference(xp, w1p, b1p, w2p, b2p)
        out = out if Dp == D else out[:, :D]
        return out.reshape(B, S, D)

    # ---- generation-aware tiling ------------------------------------------
    cap = _vmem_capacity_bytes()
    big_vmem = cap >= 100 * 1024 * 1024          # v5e/v6e (128 MiB) vs v7x (64 MiB/TC)
    tm_cap = 1024 if big_vmem else 512
    th_cap = 2048 if big_vmem else 1024

    # Row tiling: at least 2 tiles so the BlockSpec pipeline actually overlaps.
    TM = max(128, min(tm_cap, _round_up(_cdiv(M, 2), 128)))
    # Hidden-dim chunking (evenly divides Hp; single chunk when H is small).
    TH = _pick_hidden_chunk(Hp, th_cap)

    x_isz = jnp.dtype(x.dtype).itemsize
    w_isz = jnp.dtype(w1p.dtype).itemsize

    def vmem_est(tm, th):
        n_chunks = Hp // th
        wbuf = 1 if n_chunks == 1 else 2          # resident specs -> 1 buffer
        return (2 * tm * Dp * x_isz               # x tile (double-buffered)
                + 2 * tm * Dp * x_isz             # out tile (double-buffered)
                + wbuf * (Dp * th + th * Dp + 8 * th) * w_isz   # w1, w2, b1
                + 8 * Dp * 4                      # b2 (f32, single-buffered)
                + tm * Dp * 4                     # f32 accumulator scratch
                + tm * th * 4)                    # f32 hidden intermediate

    # Shrink TH (then TM) until the per-TensorCore working set fits the budget.
    budget = max(16 * 1024 * 1024, int(0.5 * cap))
    while vmem_est(TM, TH) > budget and (TH > 128 or TM > 128):
        if TH > 128:
            TH = _pick_hidden_chunk(Hp, TH // 2)
        else:
            TM = max(128, TM // 2)

    Mp = _round_up(M, TM)
    num_tiles_m = Mp // TM
    num_chunks_h = Hp // TH
    resident = num_chunks_h == 1

    # Per-call activation padding only when shapes are not already aligned.
    # (Padded rows compute garbage that is sliced off; padded lanes are zero.)
    if Mp != M or Dp != D:
        x2d = jnp.pad(x2d, ((0, Mp - M), (0, Dp - D)))

    vmem_limit = int(min(max(int(1.5 * vmem_est(TM, TH)), 16 * 1024 * 1024),
                         int(0.6 * cap)))

    weight_reads = 1 if resident else num_tiles_m
    cost = pl.CostEstimate(
        flops=4 * Mp * Dp * Hp,                   # two matmuls (padded work)
        transcendentals=0,
        bytes_accessed=(2 * Mp * Dp * x_isz
                        + weight_reads * (Dp * Hp + Hp * Dp) * w_isz
                        + (Hp + Dp) * 4),
    )

    # Resident (constant-index) operands: single-buffer to halve their VMEM.
    w_mode = pl.Buffered(1) if resident else None

    out2d = pl.pallas_call(
        residual_mlp_kernel,
        out_shape=jax.ShapeDtypeStruct((Mp, Dp), x.dtype),
        grid_spec=pltpu.PrefetchScalarGridSpec(
            num_scalar_prefetch=0,
            grid=(num_tiles_m, num_chunks_h),
            in_specs=[
                pl.BlockSpec((TM, Dp), lambda i, k: (i, 0)),            # x tile
                pl.BlockSpec((Dp, TH), lambda i, k: (0, k),
                             pipeline_mode=w_mode),                     # w1 chunk
                pl.BlockSpec((1, TH), lambda i, k: (0, k),
                             pipeline_mode=w_mode),                     # b1 chunk
                pl.BlockSpec((TH, Dp), lambda i, k: (k, 0),
                             pipeline_mode=w_mode),                     # w2 chunk
                pl.BlockSpec((1, Dp), lambda i, k: (0, 0),
                             pipeline_mode=pl.Buffered(1)),             # b2 (resident)
            ],
            out_specs=pl.BlockSpec((TM, Dp), lambda i, k: (i, 0)),
            scratch_shapes=[pltpu.VMEM((TM, Dp), jnp.float32)],
        ),
        compiler_params=pltpu.CompilerParams(
            # Independent row tiles: shard across both TCs on v7x; hidden-dim
            # chunks are a reduction -> "arbitrary" (and last in the grid).
            dimension_semantics=("parallel", "arbitrary"),
            vmem_limit_bytes=vmem_limit,
        ),
        cost_estimate=cost,
    )(x2d, w1p, b1p, w2p, b2p)

    if Mp != M or Dp != D:
        out2d = out2d[:M, :D]
    return out2d.reshape(B, S, D)


if __name__ == "__main__":
    key = jax.random.PRNGKey(0)
    kx, k1, k2, k3, k4, kx2 = jax.random.split(key, 6)

    # Small-but-kernel-worthy shapes: batch=2, seq=128 -> M=256 rows (Pallas
    # path, 2 row tiles), features D=32, MLP hidden H=64 (padded to 128 lanes).
    B, S, D, H = 2, 128, 32, 64

    x = jax.random.normal(kx, (B, S, D), dtype=jnp.float32)
    # Deterministic synthetic parameter init (no checkpoint load).
    w1 = jax.random.normal(k1, (D, H), dtype=jnp.float32) * (1.0 / jnp.sqrt(D))
    b1 = jax.random.normal(k2, (H,), dtype=jnp.float32) * 0.01
    w2 = jax.random.normal(k3, (H, D), dtype=jnp.float32) * (1.0 / jnp.sqrt(H))
    b2 = jax.random.normal(k4, (D,), dtype=jnp.float32) * 0.01

    # One-time param prep (padding + bf16 cast) — "init time", not per call.
    w1p, b1p, w2p, b2p = prepare_residual_mlp_params(w1, b1, w2, b2)

    # --- Pallas path ---------------------------------------------------------
    out = jax.block_until_ready(residual_forward(x, w1p, b1p, w2p, b2p))
    assert out.shape == x.shape and out.dtype == x.dtype

    # Exact-numerics reference (same bf16 matmul / f32 accumulate math).
    x2d = x.reshape(-1, D)
    xp = jnp.pad(x2d, ((0, 0), (0, w1p.shape[0] - D)))
    ref_bf16 = _padded_reference(xp, w1p, b1p, w2p, b2p)[:, :D].reshape(B, S, D)
    assert jnp.allclose(out, ref_bf16, atol=2e-3, rtol=2e-3), \
        "mismatch vs bf16-math reference (pallas path)"

    # Loose check vs full-precision Residual(MLP) forward (bf16 matmul tolerance).
    ref_f32 = x + (jnp.maximum(x @ w1 + b1, 0.0) @ w2 + b2)
    assert jnp.allclose(out, ref_f32, atol=1e-1, rtol=1e-1), \
        "mismatch vs f32 reference (pallas path)"

    # --- Tiny-shape fallback path (pure XLA) ---------------------------------
    x_small = jax.random.normal(kx2, (2, 8, D), dtype=jnp.float32)
    out_small = jax.block_until_ready(residual_forward(x_small, w1p, b1p, w2p, b2p))
    ref_small = x_small + (jnp.maximum(x_small @ w1 + b1, 0.0) @ w2 + b2)
    assert jnp.allclose(out_small, ref_small, atol=1e-1, rtol=1e-1), \
        "mismatch (fallback path)"

    print("KERNEL_OK")
</pallas_src>

<mosaic_0001>
module attributes {stable_mosaic.version = 11 : i64} {
  func.func @residual_mlp_kernel(%arg0: i32, %arg1: i32, %arg2: memref<128x128xf32, #tpu.memory_space<vmem>>, %arg3: memref<128x128xbf16, #tpu.memory_space<vmem>>, %arg4: memref<1x128xf32, #tpu.memory_space<vmem>>, %arg5: memref<128x128xbf16, #tpu.memory_space<vmem>>, %arg6: memref<1x128xf32, #tpu.memory_space<vmem>>, %arg7: memref<128x128xf32, #tpu.memory_space<vmem>>, %arg8: memref<128x128xf32, #tpu.memory_space<vmem>>) attributes {dimension_semantics = [#tpu.dimension_semantics<parallel>, #tpu.dimension_semantics<arbitrary>], iteration_bounds = array<i64: 2, 1>, scalar_prefetch = 0 : i64, scratch_operands = 1 : i64, tpu.core_type = #tpu.core_type<tc>, window_params = [{transform_indices = @transform_0, window_bounds = array<i64: 128, 128>}, {pipeline_mode = #tpu.pipeline_mode<synchronous>, transform_indices = @transform_1, window_bounds = array<i64: 128, 128>}, {pipeline_mode = #tpu.pipeline_mode<synchronous>, transform_indices = @transform_2, window_bounds = array<i64: 1, 128>}, {pipeline_mode = #tpu.pipeline_mode<synchronous>, transform_indices = @transform_3, window_bounds = array<i64: 128, 128>}, {pipeline_mode = #tpu.pipeline_mode<synchronous>, transform_indices = @transform_4, window_bounds = array<i64: 1, 128>}, {transform_indices = @transform_5, window_bounds = array<i64: 128, 128>}]} {
    %c0_i32 = arith.constant 0 : i32
    %0 = arith.cmpi eq, %arg1, %c0_i32 : i32
    %1 = arith.extui %0 : i1 to i32
    %c0_i32_0 = arith.constant 0 : i32
    %2 = arith.cmpi ne, %1, %c0_i32_0 : i32
    scf.if %2 {
      %cst_16 = arith.constant 0.000000e+00 : f32
      %21 = vector.broadcast %cst_16 : f32 to vector<128x128xf32>
      %c0_17 = arith.constant 0 : index
      %c0_18 = arith.constant 0 : index
      %22 = vector.load %arg8[%c0_17, %c0_18] : memref<128x128xf32, #tpu.memory_space<vmem>>, vector<128x128xf32>
      tpu.vector_store %arg8[%c0_17, %c0_18], %21 {strides = array<i32>} : memref<128x128xf32, #tpu.memory_space<vmem>>, vector<128x128xf32>,
    } else {
    }
    %c0 = arith.constant 0 : index
    %c0_1 = arith.constant 0 : index
    %3 = vector.load %arg2[%c0, %c0_1] : memref<128x128xf32, #tpu.memory_space<vmem>>, vector<128x128xf32>
    %4 = arith.truncf %3 : vector<128x128xf32> to vector<128x128xbf16>
    %c0_2 = arith.constant 0 : index
    %c0_3 = arith.constant 0 : index
    %5 = vector.load %arg3[%c0_2, %c0_3] : memref<128x128xbf16, #tpu.memory_space<vmem>>, vector<128x128xbf16>
    %cst = arith.constant dense<0.000000e+00> : vector<128x128xf32>
    %6 = tpu.matmul %4, %5, %cst {dimension_numbers = #tpu.dot_dimension_numbers<[1], [0], [0], [1], [0, 0, 1, 1], [], []>} : vector<128x128xbf16>, vector<128x128xbf16>, vector<128x128xf32> -> vector<128x128xf32>
    %c0_4 = arith.constant 0 : index
    %c0_5 = arith.constant 0 : index
    %7 = vector.load %arg4[%c0_4, %c0_5] : memref<1x128xf32, #tpu.memory_space<vmem>>, vector<1x128xf32>
    %8 = vector.broadcast %7 : vector<1x128xf32> to vector<128x128xf32>
    %9 = arith.addf %6, %8 : vector<128x128xf32>
    %cst_6 = arith.constant 0.000000e+00 : f32
    %10 = vector.broadcast %cst_6 : f32 to vector<128x128xf32>
    %11 = arith.maximumf %9, %10 : vector<128x128xf32>
    %c0_7 = arith.constant 0 : index
    %c0_8 = arith.constant 0 : index
    %12 = vector.load %arg8[%c0_7, %c0_8] : memref<128x128xf32, #tpu.memory_space<vmem>>, vector<128x128xf32>
    %13 = arith.truncf %11 : vector<128x128xf32> to vector<128x128xbf16>
    %c0_9 = arith.constant 0 : index
    %c0_10 = arith.constant 0 : index
    %14 = vector.load %arg5[%c0_9, %c0_10] : memref<128x128xbf16, #tpu.memory_space<vmem>>, vector<128x128xbf16>
    %cst_11 = arith.constant dense<0.000000e+00> : vector<128x128xf32>
    %15 = tpu.matmul %13, %14, %cst_11 {dimension_numbers = #tpu.dot_dimension_numbers<[1], [0], [0], [1], [0, 0, 1, 1], [], []>} : vector<128x128xbf16>, vector<128x128xbf16>, vector<128x128xf32> -> vector<128x128xf32>
    %16 = arith.addf %12, %15 : vector<128x128xf32>
    %c0_12 = arith.constant 0 : index
    %c0_13 = arith.constant 0 : index
    %17 = vector.load %arg8[%c0_12, %c0_13] : memref<128x128xf32, #tpu.memory_space<vmem>>, vector<128x128xf32>
    tpu.vector_store %arg8[%c0_12, %c0_13], %16 {strides = array<i32>} : memref<128x128xf32, #tpu.memory_space<vmem>>, vector<128x128xf32>,
    %c0_i32_14 = arith.constant 0 : i32
    %18 = arith.cmpi eq, %arg1, %c0_i32_14 : i32
    %19 = arith.extui %18 : i1 to i32
    %c0_i32_15 = arith.constant 0 : i32
    %20 = arith.cmpi ne, %19, %c0_i32_15 : i32
    scf.if %20 {
      %c0_16 = arith.constant 0 : index
      %c0_17 = arith.constant 0 : index
      %21 = vector.load %arg8[%c0_16, %c0_17] : memref<128x128xf32, #tpu.memory_space<vmem>>, vector<128x128xf32>
      %c0_18 = arith.constant 0 : index
      %c0_19 = arith.constant 0 : index
      %22 = vector.load %arg6[%c0_18, %c0_19] : memref<1x128xf32, #tpu.memory_space<vmem>>, vector<1x128xf32>
      %23 = vector.broadcast %22 : vector<1x128xf32> to vector<128x128xf32>
      %24 = arith.addf %21, %23 : vector<128x128xf32>
      %25 = arith.addf %3, %24 : vector<128x128xf32>
      %c0_20 = arith.constant 0 : index
      %c0_21 = arith.constant 0 : index
      %26 = vector.load %arg7[%c0_20, %c0_21] : memref<128x128xf32, #tpu.memory_space<vmem>>, vector<128x128xf32>
      tpu.vector_store %arg7[%c0_20, %c0_21], %25 {strides = array<i32>} : memref<128x128xf32, #tpu.memory_space<vmem>>, vector<128x128xf32>,
    } else {
    }
    return
  }
  func.func @transform_0(%arg0: i32, %arg1: i32) -> (i32, i32) {
    %c0_i32 = arith.constant 0 : i32
    %c0_i32_0 = arith.constant 0 : i32
    return %arg0, %c0_i32 : i32, i32
  }
  func.func @transform_1(%arg0: i32, %arg1: i32) -> (i32, i32) {
    %c0_i32 = arith.constant 0 : i32
    %c0_i32_0 = arith.constant 0 : i32
    return %c0_i32, %arg1 : i32, i32
  }
  func.func @transform_2(%arg0: i32, %arg1: i32) -> (i32, i32) {
    %c0_i32 = arith.constant 0 : i32
    %c0_i32_0 = arith.constant 0 : i32
    return %c0_i32, %arg1 : i32, i32
  }
  func.func @transform_3(%arg0: i32, %arg1: i32) -> (i32, i32) {
    %c0_i32 = arith.constant 0 : i32
    %c0_i32_0 = arith.constant 0 : i32
    return %arg1, %c0_i32 : i32, i32
  }
  func.func @transform_4(%arg0: i32, %arg1: i32) -> (i32, i32) {
    %c0_i32 = arith.constant 0 : i32
    %c0_i32_0 = arith.constant 0 : i32
    %c0_i32_1 = arith.constant 0 : i32
    return %c0_i32, %c0_i32_0 : i32, i32
  }
  func.func @transform_5(%arg0: i32, %arg1: i32) -> (i32, i32) {
    %c0_i32 = arith.constant 0 : i32
    %c0_i32_0 = arith.constant 0 : i32
    return %arg0, %c0_i32 : i32, i32
  }
}

</mosaic_0001>

<llo_original>
// kernel: residual_forward.1
$region0: #{residual_forward.1}
  #allocation0 [shape = 'u32[]', space=smem, size = 0x4, offset = 0x4, fixed_abs, tag = 'smem constant byte address 0x4 - core index']
  #allocation1 [shape = 'u32[144,128]{1,0:T(1,128)}', space=vmem, size = 0x12000, scoped, tag = 'internal scratch']
  #allocation2 [shape = 'f32[128,128]{1,0:T(8,128)}', space=vmem, size = 0x10000, scoped, tag = 'scratch operand']
  %s0 = inlined_call_operand.vmem [shape: f32[256,128], index: 0, kind: input, shape index: {}]
  %s1 = inlined_call_operand.vmem [shape: bf16[128,128], index: 1, kind: input, shape index: {}]
  %s2 = inlined_call_operand.vmem [shape: f32[1,128], index: 2, kind: input, shape index: {}]
  %s3 = inlined_call_operand.vmem [shape: bf16[128,128], index: 3, kind: input, shape index: {}]
  %s4 = inlined_call_operand.vmem [shape: f32[1,128], index: 4, kind: input, shape index: {}]
  %s5 = inlined_call_operand.vmem [shape: f32[256,128], index: 5, kind: output, shape index: {}]
  %s6 = sld [smem:[#allocation0]]
  $region61: #{residual_forward.1} parent=0
    _
  %s8 = ssub.s32 1, %s6
  %s9 = scalar_select 0, %s8, %s6
  loop: start=0, step=1, limit=4
  $region2: #{residual_forward.1} parent=0 // loop_pre_header
    _
  $region3: #{residual_forward.1} parent=0 // loop_header
    %s11 = sphi 0, %s15
    %p12 = scmp.ge.s32.totalorder %s11, 4
    %s18 = sphi 0, %s30
    %s19 = sphi 0, %s26
    %s20 = sphi 0, %s18
    %s21 = sphi 0, %s19
    %s22 = sphi 0, %s20
    %s23 = sphi 0, %s21
    %s33 = sphi 0, %s35
    %s36 = sphi 0, %s33
    %s37 = sphi 0, %s36
    %s53 = sphi 0, %s37
    %s59 = sphi 0, %s61
    %s62 = sphi 0, %s59
    %s63 = sphi 0, %s62
    %s79 = sphi 0, %s63
    %s85 = sphi 0, %s87
    %s88 = sphi 0, %s85
    %s89 = sphi 0, %s88
    %s105 = sphi 0, %s89
    %s111 = sphi 0, %s113
    %s114 = sphi 0, %s111
    %s115 = sphi 0, %s114
    %s131 = sphi 0, %s115
    %s135 = sphi 0, %s135
    %s137 = sphi 0, %s135
    %s138 = sphi 0, %s137
    %s152 = sphi 0, %s138
    %s158 = sphi 0, %s160
    %s161 = sphi 0, %s158
    %s162 = sphi 0, %s161
    %s178 = sphi 0, %s162
  $region4: #{residual_forward.1} parent=0 // loop_header_branch
    %14 = sbr.rel (%p12) target = $region8
  $region5: #{residual_forward.1} parent=0 // loop_body
    %s16 = ssub.s32 %s11, 1
    %s17 = ssub.s32 %s11, 2
    %s24 = sadd.s32 1, %s19
    %p25 = scmp.ge.s32.totalorder %s24, 1
    %s26 = scalar_select %p25, 0, %s24
    %s27 = sadd.s32 1, %s18
    %s28 = scalar_select %p25, %s27, %s18
    %p29 = scmp.ge.s32.totalorder %s28, 2
    %s30 = scalar_select %p29, 0, %s28
    %s31 = ssub.s32 %s18, %s30
    %p32 = scmp.eq.s32.totalorder %s31, 0
    %s34 = sadd.s32 %s33, 1
    %s35 = scalar_select %p32, %s33, %s34
    %p38 = pneg %p32
    %p39 = scmp.eq.s32.totalorder %s11, 1
    %p40 = por %p38, %p39
    %p41 = scmp.ne.s32.totalorder %s33, %s36
    %p42 = scmp.eq.s32.totalorder %s11, 0
    %p43 = por %p41, %p42
    %p44 = scmp.ne.s32.totalorder %s33, %s36
    %p45 = scmp.eq.s32.totalorder %s16, 1
    %p46 = por %p44, %p45
    %p47 = scmp.ne.s32.totalorder %s36, %s37
    %p48 = scmp.eq.s32.totalorder %s16, 0
    %p49 = por %p47, %p48
    %p50 = scmp.ne.s32.totalorder %s36, %s37
    %p51 = scmp.eq.s32.totalorder %s17, 1
    %p52 = por %p50, %p51
    %p54 = scmp.ne.s32.totalorder %s37, %s53
    %p55 = scmp.eq.s32.totalorder %s17, 0
    %p56 = por %p54, %p55
    %s57 = ssub.s32 %s19, %s26
    %p58 = scmp.eq.s32.totalorder %s57, 0
    %s60 = sadd.s32 %s59, 1
    %s61 = scalar_select %p58, %s59, %s60
    %p64 = pneg %p58
    %p65 = scmp.eq.s32.totalorder %s11, 1
    %p66 = por %p64, %p65
    %p67 = scmp.ne.s32.totalorder %s59, %s62
    %p68 = scmp.eq.s32.totalorder %s11, 0
    %p69 = por %p67, %p68
    %p70 = scmp.ne.s32.totalorder %s59, %s62
    %p71 = scmp.eq.s32.totalorder %s16, 1
    %p72 = por %p70, %p71
    %p73 = scmp.ne.s32.totalorder %s62, %s63
    %p74 = scmp.eq.s32.totalorder %s16, 0
    %p75 = por %p73, %p74
    %p76 = scmp.ne.s32.totalorder %s62, %s63
    %p77 = scmp.eq.s32.totalorder %s17, 1
    %p78 = por %p76, %p77
    %p80 = scmp.ne.s32.totalorder %s63, %s79
    %p81 = scmp.eq.s32.totalorder %s17, 0
    %p82 = por %p80, %p81
    %s83 = ssub.s32 %s19, %s26
    %p84 = scmp.eq.s32.totalorder %s83, 0
    %s86 = sadd.s32 %s85, 1
    %s87 = scalar_select %p84, %s85, %s86
    %p90 = pneg %p84
    %p91 = scmp.eq.s32.totalorder %s11, 1
    %p92 = por %p90, %p91
    %p93 = scmp.ne.s32.totalorder %s85, %s88
    %p94 = scmp.eq.s32.totalorder %s11, 0
    %p95 = por %p93, %p94
    %p96 = scmp.ne.s32.totalorder %s85, %s88
    %p97 = scmp.eq.s32.totalorder %s16, 1
    %p98 = por %p96, %p97
    %p99 = scmp.ne.s32.totalorder %s88, %s89
    %p100 = scmp.eq.s32.totalorder %s16, 0
    %p101 = por %p99, %p100
    %p102 = scmp.ne.s32.totalorder %s88, %s89
    %p103 = scmp.eq.s32.totalorder %s17, 1
    %p104 = por %p102, %p103
    %p106 = scmp.ne.s32.totalorder %s89, %s105
    %p107 = scmp.eq.s32.totalorder %s17, 0
    %p108 = por %p106, %p107
    %s109 = ssub.s32 %s19, %s26
    %p110 = scmp.eq.s32.totalorder %s109, 0
    %s112 = sadd.s32 %s111, 1
    %s113 = scalar_select %p110, %s111, %s112
    %p116 = pneg %p110
    %p117 = scmp.eq.s32.totalorder %s11, 1
    %p118 = por %p116, %p117
    %p119 = scmp.ne.s32.totalorder %s111, %s114
    %p120 = scmp.eq.s32.totalorder %s11, 0
    %p121 = por %p119, %p120
    %p122 = scmp.ne.s32.totalorder %s111, %s114
    %p123 = scmp.eq.s32.totalorder %s16, 1
    %p124 = por %p122, %p123
    %p125 = scmp.ne.s32.totalorder %s114, %s115
    %p126 = scmp.eq.s32.totalorder %s16, 0
    %p127 = por %p125, %p126
    %p128 = scmp.ne.s32.totalorder %s114, %s115
    %p129 = scmp.eq.s32.totalorder %s17, 1
    %p130 = por %p128, %p129
    %p132 = scmp.ne.s32.totalorder %s115, %s131
    %p133 = scmp.eq.s32.totalorder %s17, 0
    %p134 = por %p132, %p133
    %s136 = sadd.s32 %s135, 1
    %p139 = scmp.eq.s32.totalorder %s11, 1
    %p140 = scmp.ne.s32.totalorder %s135, %s137
    %p141 = scmp.eq.s32.totalorder %s11, 0
    %p142 = por %p140, %p141
    %p143 = scmp.ne.s32.totalorder %s135, %s137
    %p144 = scmp.eq.s32.totalorder %s16, 1
    %p145 = por %p143, %p144
    %p146 = scmp.ne.s32.totalorder %s137, %s138
    %p147 = scmp.eq.s32.totalorder %s16, 0
    %p148 = por %p146, %p147
    %p149 = scmp.ne.s32.totalorder %s137, %s138
    %p150 = scmp.eq.s32.totalorder %s17, 1
    %p151 = por %p149, %p150
    %p153 = scmp.ne.s32.totalorder %s138, %s152
    %p154 = scmp.eq.s32.totalorder %s17, 0
    %p155 = por %p153, %p154
    %s156 = ssub.s32 %s18, %s30
    %p157 = scmp.eq.s32.totalorder %s156, 0
    %s159 = sadd.s32 %s158, 1
    %s160 = scalar_select %p157, %s158, %s159
    %p163 = pneg %p157
    %p164 = scmp.eq.s32.totalorder %s11, 1
    %p165 = por %p163, %p164
    %p166 = scmp.ne.s32.totalorder %s158, %s161
    %p167 = scmp.eq.s32.totalorder %s11, 0
    %p168 = por %p166, %p167
    %p169 = scmp.ne.s32.totalorder %s158, %s161
    %p170 = scmp.eq.s32.totalorder %s16, 1
    %p171 = por %p169, %p170
    %p172 = scmp.ne.s32.totalorder %s161, %s162
    %p173 = scmp.eq.s32.totalorder %s16, 0
    %p174 = por %p172, %p173
    %p175 = scmp.ne.s32.totalorder %s161, %s162
    %p176 = scmp.eq.s32.totalorder %s17, 1
    %p177 = por %p175, %p176
    %p179 = scmp.ne.s32.totalorder %s162, %s178
    %p180 = scmp.eq.s32.totalorder %s17, 0
    %p181 = por %p179, %p180
    %p182 = scmp.le.s32.totalorder 1, %s11
    %p183 = scmp.lt.s32.totalorder %s11, 3
    %p184 = pnand %p182, %p183
    %p185 = pneg %p184
    // Predicated region
    $region9: #{residual_forward.1} parent=5 // pred_check
      _
    $region10: #{residual_forward.1} parent=5 // pred_check_branch
      %187 = sbr.rel (%p184) target = $region12
    $region11: #{residual_forward.1} parent=5 // pred_region
      %s188 = ssub.s32 %s11, 1
      // Predicated region
      $region13: #{residual_forward.1} parent=11 // pred_check
        %p189 = pneg %p75
      $region14: #{residual_forward.1} parent=11 // pred_check_branch
        %191 = sbr.rel (%p189) target = $region16
      $region15: #{residual_forward.1} parent=11 // pred_region
        %p192 = scmp.lt.s32.totalorder %s21, 0
        %s193 = scalar_select %p192, %s21, 0
        %s194 = smul.addr %s193, 4
        %s195 = scalar_lea.vmem %s1, %s194
      $region16: #{residual_forward.1} parent=11 // pred_fallthru
        _
      // Predicated region
      $region17: #{residual_forward.1} parent=11 // pred_check
        %p196 = pneg %p101
      $region18: #{residual_forward.1} parent=11 // pred_check_branch
        %198 = sbr.rel (%p196) target = $region20
      $region19: #{residual_forward.1} parent=11 // pred_region
        %p199 = scmp.lt.s32.totalorder %s21, 0
        %s200 = scalar_select %p199, %s21, 0
        %s201 = scalar_lea.vmem %s2, %s200
      $region20: #{residual_forward.1} parent=11 // pred_fallthru
        _
      // Predicated region
      $region21: #{residual_forward.1} parent=11 // pred_check
        %p202 = pneg %p127
      $region22: #{residual_forward.1} parent=11 // pred_check_branch
        %204 = sbr.rel (%p202) target = $region24
      $region23: #{residual_forward.1} parent=11 // pred_region
        %s205 = smul.u32 16, %s21
        %p206 = scmp.lt.s32.totalorder %s205, 15
        %s207 = scalar_select %p206, %s205, 15
        %s208 = smul.addr %s207, 4
        %s209 = scalar_lea.vmem %s3, %s208
        %s210 = smul.u32 16, %s21
      $region24: #{residual_forward.1} parent=11 // pred_fallthru
        _
      // Predicated region
      $region25: #{residual_forward.1} parent=11 // pred_check
        %p211 = pneg %p148
      $region26: #{residual_forward.1} parent=11 // pred_check_branch
        %213 = sbr.rel (%p211) target = $region28
      $region27: #{residual_forward.1} parent=11 // pred_region
        _
      $region28: #{residual_forward.1} parent=11 // pred_fallthru
        _
    $region12: #{residual_forward.1} parent=5 // pred_fallthru
      _
    %p214 = scmp.lt.s32.totalorder %s11, 2
    // Predicated region
    $region29: #{residual_forward.1} parent=5 // pred_check
      %p215 = pneg %p214
    $region30: #{residual_forward.1} parent=5 // pred_check_branch
      %217 = sbr.rel (%p215) target = $region32
    $region31: #{residual_forward.1} parent=5 // pred_region
      // Predicated region
      $region33: #{residual_forward.1} parent=31 // pred_check
        %p218 = pneg %p43
      $region34: #{residual_forward.1} parent=31 // pred_check_branch
        %220 = sbr.rel (%p218) target = $region36
      $region35: #{residual_forward.1} parent=31 // pred_region
        %s221 = smul.u32 16, %s18
        %p222 = scmp.lt.s32.totalorder %s221, 31
        %s223 = scalar_select %p222, %s221, 31
        %s224 = smul.addr %s223, 8
        %s225 = scalar_lea.vmem %s0, %s224
        %s226 = smul.u32 16, %s18
      $region36: #{residual_forward.1} parent=31 // pred_fallthru
        _
    $region32: #{residual_forward.1} parent=5 // pred_fallthru
      _
    %p227 = scmp.le.s32.totalorder 1, %s11
    %p228 = scmp.lt.s32.totalorder %s11, 3
    %p229 = pnand %p227, %p228
    %p230 = pneg %p229
    // Predicated region
    $region37: #{residual_forward.1} parent=5 // pred_check
      _
    $region38: #{residual_forward.1} parent=5 // pred_check_branch
      %232 = sbr.rel (%p229) target = $region40
    $region39: #{residual_forward.1} parent=5 // pred_region
      %s233 = ssub.s32 %s11, 1
      %s234 = smul.u32 16, %s20
      %p235 = scmp.lt.s32.totalorder %s234, 31
      %s236 = scalar_select %p235, %s234, 31
      %s237 = smul.addr %s236, 8
      %s238 = scalar_lea.vmem %s0, %s237
      %p239 = pneg %p49
      %p240 = pneg %p46
      %p241 = scmp.lt.s32.totalorder %s21, 0
      %s242 = scalar_select %p241, %s21, 0
      %s243 = smul.addr %s242, 4
      %s244 = scalar_lea.vmem %s1, %s243
      %p245 = pneg %p75
      %p246 = pneg %p72
      %p247 = scmp.lt.s32.totalorder %s21, 0
      %s248 = scalar_select %p247, %s21, 0
      %s249 = scalar_lea.vmem %s2, %s248
      %p250 = pneg %p101
      %p251 = pneg %p98
      %s252 = smul.u32 16, %s21
      %p253 = scmp.lt.s32.totalorder %s252, 15
      %s254 = scalar_select %p253, %s252, 15
      %s255 = smul.addr %s254, 4
      %s256 = scalar_lea.vmem %s3, %s255
      %p257 = pneg %p127
      %p258 = pneg %p124
      %p259 = pneg %p148
      %p260 = pneg %p145
      %p261 = pneg %p174
      %p262 = pneg %p171
      %s263 = smul.u32 16, %s20
      %p264 = scmp.lt.s32.totalorder %s263, 31
      %s265 = scalar_select %p264, %s263, 31
      %s266 = smul.addr %s265, 8
      %s267 = scalar_lea.vmem %s5, %s266
      %s268 = smul.u32 16, %s20
      %p269 = scmp.lt.s32.totalorder %s268, 31
      %s270 = scalar_select %p269, %s268, 31
      %s271 = smul.addr %s270, 8
      %s272 = scalar_lea.vmem %s0, %s271
      %s273 = smul.u32 16, %s20
      %p274 = scmp.lt.s32.totalorder %s21, 0
      %s275 = scalar_select %p274, %s21, 0
      %s276 = smul.addr %s275, 4
      %s277 = scalar_lea.vmem %s1, %s276
      %p278 = scmp.lt.s32.totalorder %s21, 0
      %s279 = scalar_select %p278, %s21, 0
      %s280 = scalar_lea.vmem %s2, %s279
      %s281 = smul.u32 16, %s21
      %p282 = scmp.lt.s32.totalorder %s281, 15
      %s283 = scalar_select %p282, %s281, 15
      %s284 = smul.addr %s283, 4
      %s285 = scalar_lea.vmem %s3, %s284
      %s286 = smul.u32 16, %s21
      %s287 = smul.u32 16, %s20
      %p288 = scmp.lt.s32.totalorder %s287, 31
      %s289 = scalar_select %p288, %s287, 31
      %s290 = smul.addr %s289, 8
      %s291 = scalar_lea.vmem %s5, %s290
      %s292 = smul.u32 16, %s20
      %p294 = scmp.eq.s32.totalorder %s21, 0
      // Predicated region
      $region41: #{residual_forward.1} parent=39 // pred_check
        %p295 = pneg %p294
      $region42: #{residual_forward.1} parent=39 // pred_check_branch
        %297 = sbr.rel (%p295) target = $region44
      $region43: #{residual_forward.1} parent=39 // pred_region
        %298 = vst [vmem:[#allocation2] sm:$0xff] 0.0
        %299 = vst [vmem:[#allocation2 + $0x8] sm:$0xff] 0.0
        %300 = vst [vmem:[#allocation2 + $0x10] sm:$0xff] 0.0
        %301 = vst [vmem:[#allocation2 + $0x18] sm:$0xff] 0.0
        %302 = vst [vmem:[#allocation2 + $0x20] sm:$0xff] 0.0
        %303 = vst [vmem:[#allocation2 + $0x28] sm:$0xff] 0.0
        %304 = vst [vmem:[#allocation2 + $0x30] sm:$0xff] 0.0
        %305 = vst [vmem:[#allocation2 + $0x38] sm:$0xff] 0.0
        %306 = vst [vmem:[#allocation2 + $0x40] sm:$0xff] 0.0
        %307 = vst [vmem:[#allocation2 + $0x48] sm:$0xff] 0.0
        %308 = vst [vmem:[#allocation2 + $0x50] sm:$0xff] 0.0
        %309 = vst [vmem:[#allocation2 + $0x58] sm:$0xff] 0.0
        %310 = vst [vmem:[#allocation2 + $0x60] sm:$0xff] 0.0
        %311 = vst [vmem:[#allocation2 + $0x68] sm:$0xff] 0.0
        %312 = vst [vmem:[#allocation2 + $0x70] sm:$0xff] 0.0
        %313 = vst [vmem:[#allocation2 + $0x78] sm:$0xff] 0.0
      $region44: #{residual_forward.1} parent=39 // pred_fallthru
        _
      %v314 = vld [vmem:[%s272] sm:$0xff]
      %v315 = vld [vmem:[%s272 + $0x8] sm:$0xff]
      %v316 = vld [vmem:[%s272 + $0x10] sm:$0xff]
      %v317 = vld [vmem:[%s272 + $0x18] sm:$0xff]
      %v318 = vld [vmem:[%s272 + $0x20] sm:$0xff]
      %v319 = vld [vmem:[%s272 + $0x28] sm:$0xff]
      %v320 = vld [vmem:[%s272 + $0x30] sm:$0xff]
      %v321 = vld [vmem:[%s272 + $0x38] sm:$0xff]
      %v322 = vld [vmem:[%s272 + $0x40] sm:$0xff]
      %v323 = vld [vmem:[%s272 + $0x48] sm:$0xff]
      %v324 = vld [vmem:[%s272 + $0x50] sm:$0xff]
      %v325 = vld [vmem:[%s272 + $0x58] sm:$0xff]
      %v326 = vld [vmem:[%s272 + $0x60] sm:$0xff]
      %v327 = vld [vmem:[%s272 + $0x68] sm:$0xff]
      %v328 = vld [vmem:[%s272 + $0x70] sm:$0xff]
      %v329 = vld [vmem:[%s272 + $0x78] sm:$0xff]
      %v330 = vpack.c.bf16 %v315, %v314
      %v331 = vpack.c.bf16 %v317, %v316
      %v332 = vpack.c.bf16 %v319, %v318
      %v333 = vpack.c.bf16 %v321, %v320
      %v334 = vpack.c.bf16 %v323, %v322
      %v335 = vpack.c.bf16 %v325, %v324
      %v336 = vpack.c.bf16 %v327, %v326
      %v337 = vpack.c.bf16 %v329, %v328
      %v338 = vld [vmem:[%s277] sm:$0xf]
      %v339 = vld [vmem:[%s277 + $0x4] sm:$0xf]
      %v340 = vld [vmem:[%s277 + $0x8] sm:$0xf]
      %v341 = vld [vmem:[%s277 + $0xc] sm:$0xf]
      %v342 = vld [vmem:[%s277 + $0x10] sm:$0xf]
      %v343 = vld [vmem:[%s277 + $0x14] sm:$0xf]
      %v344 = vld [vmem:[%s277 + $0x18] sm:$0xf]
      %v345 = vld [vmem:[%s277 + $0x1c] sm:$0xf]
      %v346 = vld [vmem:[%s277 + $0x20] sm:$0xf]
      %v347 = vld [vmem:[%s277 + $0x24] sm:$0xf]
      %v348 = vld [vmem:[%s277 + $0x28] sm:$0xf]
      %v349 = vld [vmem:[%s277 + $0x2c] sm:$0xf]
      %v350 = vld [vmem:[%s277 + $0x30] sm:$0xf]
      %v351 = vld [vmem:[%s277 + $0x34] sm:$0xf]
      %v352 = vld [vmem:[%s277 + $0x38] sm:$0xf]
      %v353 = vld [vmem:[%s277 + $0x3c] sm:$0xf]
      %v354 = vld [vmem:[%s280] sm:$0x1]
      %v356 = vlaneseq
      %v357 = vshrl.u32 %v356, 7
      %v358 = vsub.s32 0, %v357
      %v359 = vrot.slane %v354, %v358
      %v377 = vunpack.c.l.b16 %v338
      %v378 = vunpack.c.l.b16 %v339
      %v379 = vunpack.c.l.b16 %v340
      %v380 = vunpack.c.l.b16 %v341
      %v381 = vunpack.c.l.b16 %v342
      %v382 = vunpack.c.l.b16 %v343
      %v383 = vunpack.c.l.b16 %v344
      %v384 = vunpack.c.l.b16 %v345
      %v385 = vunpack.c.l.b16 %v346
      %v386 = vunpack.c.l.b16 %v347
      %v387 = vunpack.c.l.b16 %v348
      %v388 = vunpack.c.l.b16 %v349
      %v389 = vunpack.c.l.b16 %v350
      %v390 = vunpack.c.l.b16 %v351
      %v391 = vunpack.c.l.b16 %v352
      %v392 = vunpack.c.l.b16 %v353
      %v393 = vpack.c.b16 %v378, %v377
      %v394 = vpack.c.b16 %v380, %v379
      %v395 = vpack.c.b16 %v382, %v381
      %v396 = vpack.c.b16 %v384, %v383
      %v397 = vpack.c.b16 %v386, %v385
      %v398 = vpack.c.b16 %v388, %v387
      %v399 = vpack.c.b16 %v390, %v389
      %v400 = vpack.c.b16 %v392, %v391
      %409 = vmatprep.subr.bf16.mxu0 0
      %410 = vmatpush1.bf16.msra.mxu0 %v393
      %411 = vmatprep.subr.bf16.mxu0 0
      %412 = vmatpush1.bf16.msra.mxu0 %v394
      %413 = vmatprep.subr.bf16.mxu0 0
      %414 = vmatpush1.bf16.msra.mxu0 %v395
      %415 = vmatprep.subr.bf16.mxu0 0
      %416 = vmatpush1.bf16.msra.mxu0 %v396
      %417 = vmatprep.subr.bf16.mxu0 0
      %418 = vmatpush1.bf16.msra.mxu0 %v397
      %419 = vmatprep.subr.bf16.mxu0 0
      %420 = vmatpush1.bf16.msra.mxu0 %v398
      %421 = vmatprep.subr.bf16.mxu0 0
      %422 = vmatpush1.bf16.msra.mxu0 %v399
      %423 = vmatprep.subr.bf16.mxu0 0
      %424 = vmatpush1.bf16.msra.mxu0 %v400
      %425 = vmatprep.subr.bf16.mxu0 0
      %426 = vmatpush1.bf16.msra.mxu0 0
      %427 = vmatprep.subr.bf16.mxu0 0
      %428 = vmatpush1.bf16.msra.mxu0 0
      %429 = vmatprep.subr.bf16.mxu0 0
      %430 = vmatpush1.bf16.msra.mxu0 0
      %431 = vmatprep.subr.bf16.mxu0 0
      %432 = vmatpush1.bf16.msra.mxu0 0
      %433 = vmatprep.subr.bf16.mxu0 0
      %434 = vmatpush1.bf16.msra.mxu0 0
      %435 = vmatprep.subr.bf16.mxu0 0
      %436 = vmatpush1.bf16.msra.mxu0 0
      %437 = vmatprep.subr.bf16.mxu0 0
      %438 = vmatpush1.bf16.msra.mxu0 0
      %439 = vmatprep.subr.bf16.mxu0 0
      %440 = vmatpush1.bf16.msra.mxu0 0
      %441 = vmatprep.mubr.bf16.mxu0 0
      %442 = vmatmul.mubr.bf16.gmra.mrb[0].mxu0 %v330
      %v443 = vpop.f32.mrb[0].mxu0
      %v444 = vadd.f32 %v359, %v443
      %v445 = vpop.f32.mrb[0].mxu0
      %v446 = vpop.f32.mrb[0].mxu0
      %v447 = vadd.f32 %v359, %v446
      %v448 = vpop.f32.mrb[0].mxu0
      %449 = vmatprep.mubr.bf16.mxu0 0
      %450 = vmatmul.mubr.bf16.gmra.mrb[0].mxu0 %v331
      %v451 = vpop.f32.mrb[0].mxu0
      %v452 = vadd.f32 %v359, %v451
      %v453 = vpop.f32.mrb[0].mxu0
      %v454 = vpop.f32.mrb[0].mxu0
      %v455 = vadd.f32 %v359, %v454
      %v456 = vpop.f32.mrb[0].mxu0
      %457 = vmatprep.mubr.bf16.mxu0 0
      %458 = vmatmul.mubr.bf16.gmra.mrb[0].mxu0 %v332
      %v459 = vpop.f32.mrb[0].mxu0
      %v460 = vadd.f32 %v359, %v459
      %v461 = vpop.f32.mrb[0].mxu0
      %v462 = vpop.f32.mrb[0].mxu0
      %v463 = vadd.f32 %v359, %v462
      %v464 = vpop.f32.mrb[0].mxu0
      %465 = vmatprep.mubr.bf16.mxu0 0
      %466 = vmatmul.mubr.bf16.gmra.mrb[0].mxu0 %v333
      %v467 = vpop.f32.mrb[0].mxu0
      %v468 = vadd.f32 %v359, %v467
      %v469 = vpop.f32.mrb[0].mxu0
      %v470 = vpop.f32.mrb[0].mxu0
      %v471 = vadd.f32 %v359, %v470
      %v472 = vpop.f32.mrb[0].mxu0
      %473 = vmatprep.mubr.bf16.mxu0 0
      %474 = vmatmul.mubr.bf16.gmra.mrb[0].mxu0 %v334
      %v475 = vpop.f32.mrb[0].mxu0
      %v476 = vadd.f32 %v359, %v475
      %v477 = vpop.f32.mrb[0].mxu0
      %v478 = vpop.f32.mrb[0].mxu0
      %v479 = vadd.f32 %v359, %v478
      %v480 = vpop.f32.mrb[0].mxu0
      %481 = vmatprep.mubr.bf16.mxu0 0
      %482 = vmatmul.mubr.bf16.gmra.mrb[0].mxu0 %v335
      %v483 = vpop.f32.mrb[0].mxu0
      %v484 = vadd.f32 %v359, %v483
      %v485 = vpop.f32.mrb[0].mxu0
      %v486 = vpop.f32.mrb[0].mxu0
      %v487 = vadd.f32 %v359, %v486
      %v488 = vpop.f32.mrb[0].mxu0
      %489 = vmatprep.mubr.bf16.mxu0 0
      %490 = vmatmul.mubr.bf16.gmra.mrb[0].mxu0 %v336
      %v491 = vpop.f32.mrb[0].mxu0
      %v492 = vadd.f32 %v359, %v491
      %v493 = vpop.f32.mrb[0].mxu0
      %v494 = vpop.f32.mrb[0].mxu0
      %v495 = vadd.f32 %v359, %v494
      %v496 = vpop.f32.mrb[0].mxu0
      %497 = vmatprep.mubr.bf16.mxu0 0
      %498 = vmatmul.mubr.bf16.gmra.mrb[0].mxu0 %v337
      %v499 = vpop.f32.mrb[0].mxu0
      %v500 = vadd.f32 %v359, %v499
      %v501 = vpop.f32.mrb[0].mxu0
      %v502 = vpop.f32.mrb[0].mxu0
      %v503 = vadd.f32 %v359, %v502
      %v504 = vpop.f32.mrb[0].mxu0
      %505 = vdwg.mxu0
      %v506 = vmax.f32 %v444, 0.0
      %v507 = vmax.f32 %v447, 0.0
      %v508 = vmax.f32 %v452, 0.0
      %v509 = vmax.f32 %v455, 0.0
      %v510 = vmax.f32 %v460, 0.0
      %v511 = vmax.f32 %v463, 0.0
      %v512 = vmax.f32 %v468, 0.0
      %v513 = vmax.f32 %v471, 0.0
      %v514 = vmax.f32 %v476, 0.0
      %v515 = vmax.f32 %v479, 0.0
      %v516 = vmax.f32 %v484, 0.0
      %v517 = vmax.f32 %v487, 0.0
      %v518 = vmax.f32 %v492, 0.0
      %v519 = vmax.f32 %v495, 0.0
      %v520 = vmax.f32 %v500, 0.0
      %v521 = vmax.f32 %v503, 0.0
      %v522 = vld [vmem:[#allocation2] sm:$0xff]
      %v523 = vld [vmem:[#allocation2 + $0x8] sm:$0xff]
      %v524 = vld [vmem:[#allocation2 + $0x10] sm:$0xff]
      %v525 = vld [vmem:[#allocation2 + $0x18] sm:$0xff]
      %v526 = vld [vmem:[#allocation2 + $0x20] sm:$0xff]
      %v527 = vld [vmem:[#allocation2 + $0x28] sm:$0xff]
      %v528 = vld [vmem:[#allocation2 + $0x30] sm:$0xff]
      %v529 = vld [vmem:[#allocation2 + $0x38] sm:$0xff]
      %v530 = vld [vmem:[#allocation2 + $0x40] sm:$0xff]
      %v531 = vld [vmem:[#allocation2 + $0x48] sm:$0xff]
      %v532 = vld [vmem:[#allocation2 + $0x50] sm:$0xff]
      %v533 = vld [vmem:[#allocation2 + $0x58] sm:$0xff]
      %v534 = vld [vmem:[#allocation2 + $0x60] sm:$0xff]
      %v535 = vld [vmem:[#allocation2 + $0x68] sm:$0xff]
      %v536 = vld [vmem:[#allocation2 + $0x70] sm:$0xff]
      %v537 = vld [vmem:[#allocation2 + $0x78] sm:$0xff]
      %v538 = vpack.c.bf16 %v507, %v506
      %v539 = vpack.c.bf16 %v509, %v508
      %v540 = vpack.c.bf16 %v511, %v510
      %v541 = vpack.c.bf16 %v513, %v512
      %v542 = vpack.c.bf16 %v515, %v514
      %v543 = vpack.c.bf16 %v517, %v516
      %v544 = vpack.c.bf16 %v519, %v518
      %v545 = vpack.c.bf16 %v521, %v520
      %v546 = vld [vmem:[%s285] sm:$0xf]
      %v547 = vld [vmem:[%s285 + $0x4] sm:$0xf]
      %v548 = vld [vmem:[%s285 + $0x8] sm:$0xf]
      %v549 = vld [vmem:[%s285 + $0xc] sm:$0xf]
      %v550 = vld [vmem:[%s285 + $0x10] sm:$0xf]
      %v551 = vld [vmem:[%s285 + $0x14] sm:$0xf]
      %v552 = vld [vmem:[%s285 + $0x18] sm:$0xf]
      %v553 = vld [vmem:[%s285 + $0x1c] sm:$0xf]
      %v554 = vld [vmem:[%s285 + $0x20] sm:$0xf]
      %v555 = vld [vmem:[%s285 + $0x24] sm:$0xf]
      %v556 = vld [vmem:[%s285 + $0x28] sm:$0xf]
      %v557 = vld [vmem:[%s285 + $0x2c] sm:$0xf]
      %v558 = vld [vmem:[%s285 + $0x30] sm:$0xf]
      %v559 = vld [vmem:[%s285 + $0x34] sm:$0xf]
      %v560 = vld [vmem:[%s285 + $0x38] sm:$0xf]
      %v561 = vld [vmem:[%s285 + $0x3c] sm:$0xf]
      %v578 = vunpack.c.l.b16 %v546
      %v579 = vunpack.c.l.b16 %v547
      %v580 = vunpack.c.l.b16 %v548
      %v581 = vunpack.c.l.b16 %v549
      %v582 = vunpack.c.l.b16 %v550
      %v583 = vunpack.c.l.b16 %v551
      %v584 = vunpack.c.l.b16 %v552
      %v585 = vunpack.c.l.b16 %v553
      %v586 = vunpack.c.l.b16 %v554
      %v587 = vunpack.c.l.b16 %v555
      %v588 = vunpack.c.l.b16 %v556
      %v589 = vunpack.c.l.b16 %v557
      %v590 = vunpack.c.l.b16 %v558
      %v591 = vunpack.c.l.b16 %v559
      %v592 = vunpack.c.l.b16 %v560
      %v593 = vunpack.c.l.b16 %v561
      %v594 = vpack.c.b16 %v579, %v578
      %v595 = vpack.c.b16 %v581, %v580
      %v596 = vpack.c.b16 %v583, %v582
      %v597 = vpack.c.b16 %v585, %v584
      %v598 = vpack.c.b16 %v587, %v586
      %v599 = vpack.c.b16 %v589, %v588
      %v600 = vpack.c.b16 %v591, %v590
      %v601 = vpack.c.b16 %v593, %v592
      %610 = vmatprep.subr.bf16.mxu0 0
      %611 = vmatpush1.bf16.msra.mxu0 %v594
      %612 = vmatprep.subr.bf16.mxu0 0
      %613 = vmatpush1.bf16.msra.mxu0 %v595
      %614 = vmatprep.subr.bf16.mxu0 0
      %615 = vmatpush1.bf16.msra.mxu0 %v596
      %616 = vmatprep.subr.bf16.mxu0 0
      %617 = vmatpush1.bf16.msra.mxu0 %v597
      %618 = vmatprep.subr.bf16.mxu0 0
      %619 = vmatpush1.bf16.msra.mxu0 %v598
      %620 = vmatprep.subr.bf16.mxu0 0
      %621 = vmatpush1.bf16.msra.mxu0 %v599
      %622 = vmatprep.subr.bf16.mxu0 0
      %623 = vmatpush1.bf16.msra.mxu0 %v600
      %624 = vmatprep.subr.bf16.mxu0 0
      %625 = vmatpush1.bf16.msra.mxu0 %v601
      %626 = vmatprep.subr.bf16.mxu0 0
      %627 = vmatpush1.bf16.msra.mxu0 0
      %628 = vmatprep.subr.bf16.mxu0 0
      %629 = vmatpush1.bf16.msra.mxu0 0
      %630 = vmatprep.subr.bf16.mxu0 0
      %631 = vmatpush1.bf16.msra.mxu0 0
      %632 = vmatprep.subr.bf16.mxu0 0
      %633 = vmatpush1.bf16.msra.mxu0 0
      %634 = vmatprep.subr.bf16.mxu0 0
      %635 = vmatpush1.bf16.msra.mxu0 0
      %636 = vmatprep.subr.bf16.mxu0 0
      %637 = vmatpush1.bf16.msra.mxu0 0
      %638 = vmatprep.subr.bf16.mxu0 0
      %639 = vmatpush1.bf16.msra.mxu0 0
      %640 = vmatprep.subr.bf16.mxu0 0
      %641 = vmatpush1.bf16.msra.mxu0 0
      %642 = vmatprep.mubr.bf16.mxu0 0
      %643 = vmatmul.mubr.bf16.gmra.mrb[0].mxu0 %v538
      %v644 = vpop.f32.mrb[0].mxu0
      %v645 = vadd.f32 0.0, %v644
      %v646 = vpop.f32.mrb[0].mxu0
      %v647 = vpop.f32.mrb[0].mxu0
      %v648 = vadd.f32 0.0, %v647
      %v649 = vpop.f32.mrb[0].mxu0
      %650 = vmatprep.mubr.bf16.mxu0 0
      %651 = vmatmul.mubr.bf16.gmra.mrb[0].mxu0 %v539
      %v652 = vpop.f32.mrb[0].mxu0
      %v653 = vadd.f32 0.0, %v652
      %v654 = vpop.f32.mrb[0].mxu0
      %v655 = vpop.f32.mrb[0].mxu0
      %v656 = vadd.f32 0.0, %v655
      %v657 = vpop.f32.mrb[0].mxu0
      %658 = vmatprep.mubr.bf16.mxu0 0
      %659 = vmatmul.mubr.bf16.gmra.mrb[0].mxu0 %v540
      %v660 = vpop.f32.mrb[0].mxu0
      %v661 = vadd.f32 0.0, %v660
      %v662 = vpop.f32.mrb[0].mxu0
      %v663 = vpop.f32.mrb[0].mxu0
      %v664 = vadd.f32 0.0, %v663
      %v665 = vpop.f32.mrb[0].mxu0
      %666 = vmatprep.mubr.bf16.mxu0 0
      %667 = vmatmul.mubr.bf16.gmra.mrb[0].mxu0 %v541
      %v668 = vpop.f32.mrb[0].mxu0
      %v669 = vadd.f32 0.0, %v668
      %v670 = vpop.f32.mrb[0].mxu0
      %v671 = vpop.f32.mrb[0].mxu0
      %v672 = vadd.f32 0.0, %v671
      %v673 = vpop.f32.mrb[0].mxu0
      %674 = vmatprep.mubr.bf16.mxu0 0
      %675 = vmatmul.mubr.bf16.gmra.mrb[0].mxu0 %v542
      %v676 = vpop.f32.mrb[0].mxu0
      %v677 = vadd.f32 0.0, %v676
      %v678 = vpop.f32.mrb[0].mxu0
      %v679 = vpop.f32.mrb[0].mxu0
      %v680 = vadd.f32 0.0, %v679
      %v681 = vpop.f32.mrb[0].mxu0
      %682 = vmatprep.mubr.bf16.mxu0 0
      %683 = vmatmul.mubr.bf16.gmra.mrb[0].mxu0 %v543
      %v684 = vpop.f32.mrb[0].mxu0
      %v685 = vadd.f32 0.0, %v684
      %v686 = vpop.f32.mrb[0].mxu0
      %v687 = vpop.f32.mrb[0].mxu0
      %v688 = vadd.f32 0.0, %v687
      %v689 = vpop.f32.mrb[0].mxu0
      %690 = vmatprep.mubr.bf16.mxu0 0
      %691 = vmatmul.mubr.bf16.gmra.mrb[0].mxu0 %v544
      %v692 = vpop.f32.mrb[0].mxu0
      %v693 = vadd.f32 0.0, %v692
      %v694 = vpop.f32.mrb[0].mxu0
      %v695 = vpop.f32.mrb[0].mxu0
      %v696 = vadd.f32 0.0, %v695
      %v697 = vpop.f32.mrb[0].mxu0
      %698 = vmatprep.mubr.bf16.mxu0 0
      %699 = vmatmul.mubr.bf16.gmra.mrb[0].mxu0 %v545
      %v700 = vpop.f32.mrb[0].mxu0
      %v701 = vadd.f32 0.0, %v700
      %v702 = vpop.f32.mrb[0].mxu0
      %v703 = vpop.f32.mrb[0].mxu0
      %v704 = vadd.f32 0.0, %v703
      %v705 = vpop.f32.mrb[0].mxu0
      %706 = vdwg.mxu0
      %v707 = vadd.f32 %v522, %v645
      %v708 = vadd.f32 %v523, %v648
      %v709 = vadd.f32 %v524, %v653
      %v710 = vadd.f32 %v525, %v656
      %v711 = vadd.f32 %v526, %v661
      %v712 = vadd.f32 %v527, %v664
      %v713 = vadd.f32 %v528, %v669
      %v714 = vadd.f32 %v529, %v672
      %v715 = vadd.f32 %v530, %v677
      %v716 = vadd.f32 %v531, %v680
      %v717 = vadd.f32 %v532, %v685
      %v718 = vadd.f32 %v533, %v688
      %v719 = vadd.f32 %v534, %v693
      %v720 = vadd.f32 %v535, %v696
      %v721 = vadd.f32 %v536, %v701
      %v722 = vadd.f32 %v537, %v704
      %723 = vst [vmem:[#allocation2] sm:$0xff] %v707
      %724 = vst [vmem:[#allocation2 + $0x8] sm:$0xff] %v708
      %725 = vst [vmem:[#allocation2 + $0x10] sm:$0xff] %v709
      %726 = vst [vmem:[#allocation2 + $0x18] sm:$0xff] %v710
      %727 = vst [vmem:[#allocation2 + $0x20] sm:$0xff] %v711
      %728 = vst [vmem:[#allocation2 + $0x28] sm:$0xff] %v712
      %729 = vst [vmem:[#allocation2 + $0x30] sm:$0xff] %v713
      %730 = vst [vmem:[#allocation2 + $0x38] sm:$0xff] %v714
      %731 = vst [vmem:[#allocation2 + $0x40] sm:$0xff] %v715
      %732 = vst [vmem:[#allocation2 + $0x48] sm:$0xff] %v716
      %733 = vst [vmem:[#allocation2 + $0x50] sm:$0xff] %v717
      %734 = vst [vmem:[#allocation2 + $0x58] sm:$0xff] %v718
      %735 = vst [vmem:[#allocation2 + $0x60] sm:$0xff] %v719
      %736 = vst [vmem:[#allocation2 + $0x68] sm:$0xff] %v720
      %737 = vst [vmem:[#allocation2 + $0x70] sm:$0xff] %v721
      %738 = vst [vmem:[#allocation2 + $0x78] sm:$0xff] %v722
      // Predicated region
      $region45: #{residual_forward.1} parent=39 // pred_check
        %p739 = pneg %p294
      $region46: #{residual_forward.1} parent=39 // pred_check_branch
        %741 = sbr.rel (%p739) target = $region48
      $region47: #{residual_forward.1} parent=39 // pred_region
        %v742 = vld [vmem:[#allocation2] sm:$0xff]
        %v743 = vld [vmem:[#allocation2 + $0x8] sm:$0xff]
        %v744 = vld [vmem:[#allocation2 + $0x10] sm:$0xff]
        %v745 = vld [vmem:[#allocation2 + $0x18] sm:$0xff]
        %v746 = vld [vmem:[#allocation2 + $0x20] sm:$0xff]
        %v747 = vld [vmem:[#allocation2 + $0x28] sm:$0xff]
        %v748 = vld [vmem:[#allocation2 + $0x30] sm:$0xff]
        %v749 = vld [vmem:[#allocation2 + $0x38] sm:$0xff]
        %v750 = vld [vmem:[#allocation2 + $0x40] sm:$0xff]
        %v751 = vld [vmem:[#allocation2 + $0x48] sm:$0xff]
        %v752 = vld [vmem:[#allocation2 + $0x50] sm:$0xff]
        %v753 = vld [vmem:[#allocation2 + $0x58] sm:$0xff]
        %v754 = vld [vmem:[#allocation2 + $0x60] sm:$0xff]
        %v755 = vld [vmem:[#allocation2 + $0x68] sm:$0xff]
        %v756 = vld [vmem:[#allocation2 + $0x70] sm:$0xff]
        %v757 = vld [vmem:[#allocation2 + $0x78] sm:$0xff]
        %v758 = vld [vmem:[%s4] sm:$0x1]
        %v760 = vlaneseq
        %v761 = vshrl.u32 %v760, 7
        %v762 = vsub.s32 0, %v761
        %v763 = vrot.slane %v758, %v762
        %v765 = vadd.f32 %v742, %v763
        %v766 = vadd.f32 %v743, %v763
        %v767 = vadd.f32 %v744, %v763
        %v768 = vadd.f32 %v745, %v763
        %v769 = vadd.f32 %v746, %v763
        %v770 = vadd.f32 %v747, %v763
        %v771 = vadd.f32 %v748, %v763
        %v772 = vadd.f32 %v749, %v763
        %v773 = vadd.f32 %v750, %v763
        %v774 = vadd.f32 %v751, %v763
        %v775 = vadd.f32 %v752, %v763
        %v776 = vadd.f32 %v753, %v763
        %v777 = vadd.f32 %v754, %v763
        %v778 = vadd.f32 %v755, %v763
        %v779 = vadd.f32 %v756, %v763
        %v780 = vadd.f32 %v757, %v763
        %v781 = vadd.f32 %v314, %v765
        %v782 = vadd.f32 %v315, %v766
        %v783 = vadd.f32 %v316, %v767
        %v784 = vadd.f32 %v317, %v768
        %v785 = vadd.f32 %v318, %v769
        %v786 = vadd.f32 %v319, %v770
        %v787 = vadd.f32 %v320, %v771
        %v788 = vadd.f32 %v321, %v772
        %v789 = vadd.f32 %v322, %v773
        %v790 = vadd.f32 %v323, %v774
        %v791 = vadd.f32 %v324, %v775
        %v792 = vadd.f32 %v325, %v776
        %v793 = vadd.f32 %v326, %v777
        %v794 = vadd.f32 %v327, %v778
        %v795 = vadd.f32 %v328, %v779
        %v796 = vadd.f32 %v329, %v780
        %797 = vst [vmem:[%s291] sm:$0xff] %v781
        %798 = vst [vmem:[%s291 + $0x8] sm:$0xff] %v782
        %799 = vst [vmem:[%s291 + $0x10] sm:$0xff] %v783
        %800 = vst [vmem:[%s291 + $0x18] sm:$0xff] %v784
        %801 = vst [vmem:[%s291 + $0x20] sm:$0xff] %v785
        %802 = vst [vmem:[%s291 + $0x28] sm:$0xff] %v786
        %803 = vst [vmem:[%s291 + $0x30] sm:$0xff] %v787
        %804 = vst [vmem:[%s291 + $0x38] sm:$0xff] %v788
        %805 = vst [vmem:[%s291 + $0x40] sm:$0xff] %v789
        %806 = vst [vmem:[%s291 + $0x48] sm:$0xff] %v790
        %807 = vst [vmem:[%s291 + $0x50] sm:$0xff] %v791
        %808 = vst [vmem:[%s291 + $0x58] sm:$0xff] %v792
        %809 = vst [vmem:[%s291 + $0x60] sm:$0xff] %v793
        %810 = vst [vmem:[%s291 + $0x68] sm:$0xff] %v794
        %811 = vst [vmem:[%s291 + $0x70] sm:$0xff] %v795
        %812 = vst [vmem:[%s291 + $0x78] sm:$0xff] %v796
      $region48: #{residual_forward.1} parent=39 // pred_fallthru
        _
      %s813 = smul.u32 16, %s20
      %p814 = scmp.lt.s32.totalorder %s813, 31
      %s815 = scalar_select %p814, %s813, 31
      %s816 = smul.addr %s815, 8
      %s817 = scalar_lea.vmem %s5, %s816
      // Predicated region
      $region49: #{residual_forward.1} parent=39 // pred_check
        %p818 = pneg %p171
      $region50: #{residual_forward.1} parent=39 // pred_check_branch
        %820 = sbr.rel (%p818) target = $region52
      $region51: #{residual_forward.1} parent=39 // pred_region
        %s821 = smul.u32 16, %s20
      $region52: #{residual_forward.1} parent=39 // pred_fallthru
        _
    $region40: #{residual_forward.1} parent=5 // pred_fallthru
      _
    %p822 = scmp.le.s32.totalorder 2, %s11
    // Predicated region
    $region53: #{residual_forward.1} parent=5 // pred_check
      %p823 = pneg %p822
    $region54: #{residual_forward.1} parent=5 // pred_check_branch
      %825 = sbr.rel (%p823) target = $region56
    $region55: #{residual_forward.1} parent=5 // pred_region
      %s826 = ssub.s32 %s11, 2
      // Predicated region
      $region57: #{residual_forward.1} parent=55 // pred_check
        %p827 = pneg %p177
      $region58: #{residual_forward.1} parent=55 // pred_check_branch
        %829 = sbr.rel (%p827) target = $region60
      $region59: #{residual_forward.1} parent=55 // pred_region
        %s830 = smul.u32 16, %s22
        %p831 = scmp.lt.s32.totalorder %s830, 31
        %s832 = scalar_select %p831, %s830, 31
        %s833 = smul.addr %s832, 8
        %s834 = scalar_lea.vmem %s5, %s833
      $region60: #{residual_forward.1} parent=55 // pred_fallthru
        _
    $region56: #{residual_forward.1} parent=5 // pred_fallthru
      _
  $region6: #{residual_forward.1} parent=0 // loop_footer
    %s15 = sadd.s32 1, %s11
  $region7: #{residual_forward.1} parent=0 // loop_footer_branch
    %10 = sbr.rel target = $region3
  $region8: #{residual_forward.1} parent=0 // loop_exit
    _

</llo_original>
